<compile_context>
chip_gen: v7x
topology: tpu7x:2x2x1
jax: 0.10.0
libtpu: 0.0.40
codegen_flags: <defaults>
</compile_context>

<pallas_src>
import functools

import jax
import jax.numpy as jnp
from jax.experimental import pallas as pl
from jax.experimental.pallas import tpu as pltpu

_LANE = 128


def _round_up(a: int, b: int) -> int:
    return ((a + b - 1) // b) * b


@functools.lru_cache(maxsize=1)
def _chip_info():
    """Returns (num_tensorcores, bf16_vector_ok, block_bytes, vmem_limit_bytes).

    Defensive detection: falls back to conservative single-core / f32-math /
    4 MiB-block settings if the backend cannot be identified.
    """
    num_tc = 1
    bf16_ok = False
    block_bytes = 4 * 1024 * 1024
    vmem_limit = 32 * 1024 * 1024
    try:
        dev = jax.devices()[0]
        if dev.platform == "tpu":
            kind = getattr(dev, "device_kind", "").lower()
            if "v7" in kind:
                num_tc = 2       # two TensorCores share the parallel grid axis
                bf16_ok = True   # bf16 VPU/EUP
            elif "v6" in kind:
                bf16_ok = True
            vmem_bytes = None
            try:
                vmem_bytes = pltpu.get_tpu_info().vmem_capacity_bytes
            except Exception:
                vmem_bytes = None
            if vmem_bytes is not None and vmem_bytes >= 128 * 1024 * 1024:
                # 128 MiB-VMEM parts (v5e/v6e): bigger blocks, fewer grid steps.
                block_bytes = 8 * 1024 * 1024
                vmem_limit = 64 * 1024 * 1024
    except Exception:
        pass
    return num_tc, bf16_ok, block_bytes, vmem_limit


def _scaled_tanh_kernel(x_ref, o_ref, *, compute_dtype):
    # Elementwise hot path: EUP tanh + two VPU muls.  compute_dtype is the
    # native dtype on bf16-capable chips and f32 otherwise.
    x = x_ref[...].astype(compute_dtype)
    y = 1.7159 * jnp.tanh(x * (2.0 / 3.0))
    o_ref[...] = y.astype(o_ref.dtype)


def _pick_row_tiling(m: int, sub: int, tm_target: int, num_tc: int):
    """Pick (tm, grid) with grid = pl.cdiv(m, tm).

    The last grid step may be ragged (m % tm != 0): Pallas pads the ragged
    read and masks the out-of-bounds writes, so no wrapper pad/slice pass is
    needed for row raggedness.
    """
    if num_tc <= 1 or m <= 2 * sub:
        # Single-TC chips (v5e/v6e) or tiny slabs: never split what fits in
        # one roofline-sized block.
        if m <= tm_target:
            return m, 1
        return tm_target, pl.cdiv(m, tm_target)

    # Multi-TC (v7x): even grid across cores, prefer >= 4 steps per core so
    # each core's DMA double-buffer pipeline stays full.
    steps = max(pl.cdiv(m, tm_target), num_tc)
    if m >= 4 * num_tc * sub:
        steps = max(steps, 4 * num_tc)
    steps = _round_up(steps, num_tc)
    tm = min(_round_up(pl.cdiv(m, steps), sub), tm_target)
    tm = max(tm, sub)
    grid = pl.cdiv(m, tm)
    if grid % num_tc != 0:
        # Bounded nudge upward in sub-row steps to land on an even grid.
        t = tm
        for _ in range(16):
            t += sub
            if t > tm_target or t >= m:
                break
            g = pl.cdiv(m, t)
            if g % num_tc == 0:
                tm, grid = t, g
                break
    return tm, grid


def tan_hyperbolic(x: jax.Array, *, donate: bool = False) -> jax.Array:
    """Elementwise 1.7159 * tanh(2x/3) as a single Pallas TPU kernel."""
    orig_shape = x.shape
    dtype = x.dtype
    n = x.size
    if n == 0:
        return x

    num_tc, bf16_ok, block_bytes, vmem_limit = _chip_info()

    itemsize = jnp.dtype(dtype).itemsize
    lane = _LANE
    # Native sublane tile height: (8,128) f32, (16,128) bf16, (32,128) int8.
    sub = max(8, 32 // itemsize)
    tm_target = max(sub, (block_bytes // (lane * itemsize)) // sub * sub)

    # Lane padding only when n is not a multiple of 128; row raggedness is
    # handled by Pallas's masked boundary blocks.
    n_pad = _round_up(n, lane)
    m = n_pad // lane
    tm, grid = _pick_row_tiling(m, sub, tm_target, num_tc)

    x_flat = x.reshape(-1)
    if n_pad != n:
        x_flat = jnp.pad(x_flat, (0, n_pad - n))
    x2d = x_flat.reshape(m, lane)

    # bf16-native math on bf16-capable VPU/EUP chips (v6e/v7x); f32 otherwise.
    if itemsize >= 4 or bf16_ok:
        compute_dtype = dtype
    else:
        compute_dtype = jnp.float32

    extra = {}
    if donate and n_pad == n:
        # Only alias when no padded temporary exists, so the alias really
        # lands on the caller's buffer.
        extra["input_output_aliases"] = {0: 0}

    out2d = pl.pallas_call(
        functools.partial(_scaled_tanh_kernel, compute_dtype=compute_dtype),
        out_shape=jax.ShapeDtypeStruct((m, lane), dtype),
        grid_spec=pltpu.PrefetchScalarGridSpec(
            num_scalar_prefetch=0,
            grid=(grid,),
            in_specs=[pl.BlockSpec((tm, lane), lambda i: (i, 0))],
            out_specs=pl.BlockSpec((tm, lane), lambda i: (i, 0)),
        ),
        compiler_params=pltpu.CompilerParams(
            dimension_semantics=("parallel",),
            vmem_limit_bytes=vmem_limit,
        ),
        cost_estimate=pl.CostEstimate(
            flops=2 * n, transcendentals=n, bytes_accessed=2 * n * itemsize
        ),
        **extra,
    )(x2d)

    out_flat = out2d.reshape(-1)
    if n_pad != n:
        out_flat = out_flat[:n]
    return out_flat.reshape(orig_shape)


if __name__ == "__main__":
    key = jax.random.PRNGKey(0)
    # NCHW activation tensor, consistent with the PyTorch module's usage.
    x = jax.random.normal(key, (2, 4, 16, 16), dtype=jnp.float32)
    y = jax.block_until_ready(tan_hyperbolic(x))
    y_ref = 1.7159 * jnp.tanh(x * 2.0 / 3.0)
    assert y.shape == x.shape and y.dtype == x.dtype
    assert float(jnp.max(jnp.abs(y - y_ref))) < 1e-5

    # Unaligned element count (n % 128 != 0) exercises the lane-padding path.
    x2 = jax.random.normal(jax.random.PRNGKey(1), (3, 7, 33, 31), dtype=jnp.float32)
    y2 = jax.block_until_ready(tan_hyperbolic(x2))
    y2_ref = 1.7159 * jnp.tanh(x2 * 2.0 / 3.0)
    assert float(jnp.max(jnp.abs(y2 - y2_ref))) < 1e-5

    # Lane-aligned shape (n % 128 == 0) exercises the no-pad fast path.
    x3 = jax.random.normal(jax.random.PRNGKey(2), (2, 4, 24, 128), dtype=jnp.float32)
    y3 = jax.block_until_ready(tan_hyperbolic(x3))
    y3_ref = 1.7159 * jnp.tanh(x3 * 2.0 / 3.0)
    assert float(jnp.max(jnp.abs(y3 - y3_ref))) < 1e-5

    print("KERNEL_OK")
</pallas_src>

<mosaic_0001>
module attributes {stable_mosaic.version = 11 : i64} {
  func.func @_scaled_tanh_kernel(%arg0: i32, %arg1: memref<16x128xf32, #tpu.memory_space<vmem>>, %arg2: memref<16x128xf32, #tpu.memory_space<vmem>>) attributes {dimension_semantics = [#tpu.dimension_semantics<parallel>], iteration_bounds = array<i64: 1>, scalar_prefetch = 0 : i64, scratch_operands = 0 : i64, tpu.core_type = #tpu.core_type<tc>, window_params = [{transform_indices = @transform_0, window_bounds = array<i64: 16, 128>}, {transform_indices = @transform_1, window_bounds = array<i64: 16, 128>}]} {
    %c0 = arith.constant 0 : index
    %c0_0 = arith.constant 0 : index
    %0 = vector.load %arg1[%c0, %c0_0] : memref<16x128xf32, #tpu.memory_space<vmem>>, vector<16x128xf32>
    %cst = arith.constant 0.666666686 : f32
    %1 = vector.broadcast %cst : f32 to vector<16x128xf32>
    %2 = arith.mulf %0, %1 : vector<16x128xf32>
    %3 = math.tanh %2 : vector<16x128xf32>
    %cst_1 = arith.constant 1.715900e+00 : f32
    %4 = vector.broadcast %cst_1 : f32 to vector<16x128xf32>
    %5 = arith.mulf %4, %3 : vector<16x128xf32>
    %c0_2 = arith.constant 0 : index
    %c0_3 = arith.constant 0 : index
    %6 = vector.load %arg2[%c0_2, %c0_3] : memref<16x128xf32, #tpu.memory_space<vmem>>, vector<16x128xf32>
    tpu.vector_store %arg2[%c0_2, %c0_3], %5 {strides = array<i32>} : memref<16x128xf32, #tpu.memory_space<vmem>>, vector<16x128xf32>,
    return
  }
  func.func @transform_0(%arg0: i32) -> (i32, i32) {
    %c0_i32 = arith.constant 0 : i32
    %c0_i32_0 = arith.constant 0 : i32
    return %arg0, %c0_i32 : i32, i32
  }
  func.func @transform_1(%arg0: i32) -> (i32, i32) {
    %c0_i32 = arith.constant 0 : i32
    %c0_i32_0 = arith.constant 0 : i32
    return %arg0, %c0_i32 : i32, i32
  }
}

</mosaic_0001>

<llo_original>
// kernel: tpu_custom_call.1
$region0: #{tpu_custom_call.1}
  #allocation0 [shape = 'u32[]', space=smem, size = 0x4, offset = 0x4, fixed_abs, tag = 'smem constant byte address 0x4 - core index']
  #allocation1 [shape = 'u32[144,128]{1,0:T(1,128)}', space=vmem, size = 0x12000, scoped, tag = 'internal scratch']
  %s0 = inlined_call_operand.hbm [shape: f32[16,128], index: 0, kind: input, shape index: {}]
  %s1 = inlined_call_operand.hbm [shape: f32[16,128], index: 1, kind: output, shape index: {}]
  %s2 = sld [smem:[#allocation0]]
  $region18: #{tpu_custom_call.1} parent=0
    _
  %s4 = ssub.s32 1, %s2
  %s5 = scalar_select 0, %s4, %s2
  $region1: #{tpu_custom_call.1} parent=0
    #allocation2 [shape = 'u8[8192]{0}', space=vmem, size = 0x2000, scoped, tag = 'input window, operand 0, single buffered']
    #allocation3 [shape = 's32[1]{0}', space=sflag, size = 0x4, scoped, tag = 'scoped memory for tpu_custom_call.1']
    #allocation4 [shape = 's32[1]{0}', space=sflag, size = 0x4, scoped, tag = 'scoped memory for tpu_custom_call.1']
    #allocation5 [shape = 'u8[8192]{0}', space=vmem, size = 0x2000, scoped, tag = 'output window, operand 0, single buffered']
    %6 = vsyncpa [#allocation3], 0
    %7 = vsyncpa [#allocation4], 0
    // Predicated region
    $region2: #{tpu_custom_call.1} parent=1 // pred_check
      _
    $region3: #{tpu_custom_call.1} parent=1 // pred_check_branch
      %9 = sbr.rel (0) target = $region5
    $region4: #{tpu_custom_call.1} parent=1 // pred_region
      %s11 = ssub.s32 256, 256
      %12 = vsyncadd [#allocation3], %s11
      %s13 = sshll.u32 [#allocation2], 4
      %s14 = int_to_ptr.vmem [resolvable:$true] %s13
      %19 = dma.hbm_to_vmem [thread:$0]  %s0, 256, %s14, [#allocation3], 128, 128, 8
    $region5: #{tpu_custom_call.1} parent=1 // pred_fallthru
      _
    // Predicated region
    $region6: #{tpu_custom_call.1} parent=1 // pred_check
      _
    $region7: #{tpu_custom_call.1} parent=1 // pred_check_branch
      %21 = sbr.rel (0) target = $region9
    $region8: #{tpu_custom_call.1} parent=1 // pred_region
      %22 = dma.done [#allocation3], 256
    $region9: #{tpu_custom_call.1} parent=1 // pred_fallthru
      _
    %v23 = vld [vmem:[#allocation2] sm:$0xff]
    %v24 = vld [vmem:[#allocation2 + $0x8] sm:$0xff]
    %v25 = vmul.f32 %v23, 0.6666667
    %v26 = vmul.f32 %v24, 0.6666667
    %v27 = vtanh.pop %v25
    %v28 = vtanh.pop %v26
    %v29 = vmul.f32 %v27, 1.7159
    %v30 = vmul.f32 %v28, 1.7159
    %31 = vst [vmem:[#allocation5] sm:$0xff] %v29
    %32 = vst [vmem:[#allocation5 + $0x8] sm:$0xff] %v30
    // Predicated region
    $region10: #{tpu_custom_call.1} parent=1 // pred_check
      _
    $region11: #{tpu_custom_call.1} parent=1 // pred_check_branch
      %34 = sbr.rel (0) target = $region13
    $region12: #{tpu_custom_call.1} parent=1 // pred_region
      %s36 = ssub.s32 256, 256
      %37 = vsyncadd [#allocation4], %s36
      %s38 = sshll.u32 [#allocation5], 4
      %s39 = int_to_ptr.vmem [resolvable:$true] %s38
      %44 = dma.vmem_to_hbm [thread:$0]  %s39, 256, %s1, [#allocation4], 128, 128, 8
    $region13: #{tpu_custom_call.1} parent=1 // pred_fallthru
      _
    // Predicated region
    $region14: #{tpu_custom_call.1} parent=1 // pred_check
      _
    $region15: #{tpu_custom_call.1} parent=1 // pred_check_branch
      %46 = sbr.rel (0) target = $region17
    $region16: #{tpu_custom_call.1} parent=1 // pred_region
      %47 = dma.done [#allocation4], 256
    $region17: #{tpu_custom_call.1} parent=1 // pred_fallthru
      _
    %48 = vsyncpa [#allocation3], 1
    %49 = vsyncpa [#allocation4], 1

</llo_original>
